<compile_context>
chip_gen: v7x
topology: tpu7x:2x2x1
jax: 0.10.0
libtpu: 0.0.40
codegen_flags: <defaults>
</compile_context>

<pallas_src>
import functools
import math

import jax
import jax.numpy as jnp
from jax.experimental import pallas as pl
from jax.experimental.pallas import tpu as pltpu


def _round_up(x, m):
    return ((x + m - 1) // m) * m


def _actor_kernel(x_ref, wfc_ref, bfc_ref, wh_ref, bh_ref, out_ref, *, cont_dim):
    # One batch tile: (TM, S) activations; all weights are VMEM-resident.
    x = x_ref[...]

    # h = relu(x @ Wfc + bfc)   -- MXU matmul, f32 accumulate, VPU max.
    h = jnp.dot(x, wfc_ref[...], preferred_element_type=jnp.float32) + bfc_ref[...]
    h = jnp.maximum(h, 0.0)

    # Fused heads: y[:, :C] = mu, y[:, C:2C] = log_std, y[:, 2C:2C+D] = logits,
    # remaining columns are zero padding (lane-dense slab, multiple of 128).
    y = jnp.dot(h, wh_ref[...], preferred_element_type=jnp.float32) + bh_ref[...]

    # exp only on the log_std columns; (1, P) iota broadcasts in the select.
    col = jax.lax.broadcasted_iota(jnp.int32, (1, y.shape[-1]), 1)
    is_std = (col >= cont_dim) & (col < 2 * cont_dim)
    out_ref[...] = jnp.where(is_std, jnp.exp(y), y)


def actor_forward(state, params, *, tm=512):
    """state: (B, state_dim) float32. Returns (mu, std, logits)."""
    (wfc, bfc, wmu, bmu, wls, bls, wlg, blg) = params
    B, S = state.shape
    H = wfc.shape[1]
    C = wmu.shape[1]
    D = wlg.shape[1]

    total = 2 * C + D
    P = _round_up(total, 128)          # lane-dense combined head width

    # Fuse + zero-pad head weights/biases: columns [0:C)=mu, [C:2C)=log_std,
    # [2C:2C+D)=logits, [2C+D:P)=padding.
    wh = jnp.zeros((H, P), jnp.float32)
    wh = wh.at[:, :C].set(wmu).at[:, C:2 * C].set(wls).at[:, 2 * C:total].set(wlg)
    bh = jnp.zeros((1, P), jnp.float32)
    bh = bh.at[:, :C].set(bmu).at[:, C:2 * C].set(bls).at[:, 2 * C:total].set(blg)

    # Batch tiling: TM rows per grid step (multiple of 8 for f32 sublanes).
    TM = min(tm, _round_up(B, 8))
    B_pad = _round_up(B, TM)
    x = state if B_pad == B else jnp.pad(state, ((0, B_pad - B), (0, 0)))
    grid = (B_pad // TM,)

    kernel = functools.partial(_actor_kernel, cont_dim=C)

    cost = pl.CostEstimate(
        flops=2 * B_pad * H * (S + P) + B_pad * (H + P),
        transcendentals=B_pad * P,
        bytes_accessed=4 * (B_pad * S + S * H + H + H * P + P + B_pad * P),
    )

    out = pl.pallas_call(
        kernel,
        out_shape=jax.ShapeDtypeStruct((B_pad, P), jnp.float32),
        grid=grid,
        in_specs=[
            pl.BlockSpec((TM, S), lambda i: (i, 0)),   # streamed activations
            pl.BlockSpec((S, H), lambda i: (0, 0)),    # resident fc weight
            pl.BlockSpec((1, H), lambda i: (0, 0)),    # resident fc bias
            pl.BlockSpec((H, P), lambda i: (0, 0)),    # resident fused head weight
            pl.BlockSpec((1, P), lambda i: (0, 0)),    # resident fused head bias
        ],
        out_specs=pl.BlockSpec((TM, P), lambda i: (i, 0)),
        compiler_params=pltpu.CompilerParams(
            dimension_semantics=("parallel",)),
        cost_estimate=cost,
    )(x, wfc, bfc, wh, bh)

    mu = out[:B, :C]
    std = out[:B, C:2 * C]
    logits = out[:B, 2 * C:total]
    return mu, std, logits


def xavier_uniform(key, fan_in, fan_out):
    bound = math.sqrt(6.0 / (fan_in + fan_out))
    # stored as (in, out) = transpose of the PyTorch (out, in) weight
    return jax.random.uniform(key, (fan_in, fan_out), jnp.float32, -bound, bound)


def linear_bias(key, fan_in, fan_out):
    # PyTorch nn.Linear default bias init: U(-1/sqrt(fan_in), 1/sqrt(fan_in))
    bound = 1.0 / math.sqrt(fan_in)
    return jax.random.uniform(key, (1, fan_out), jnp.float32, -bound, bound)


def init_params(key, state_dim, continuous_action_dim, discrete_action_dim, hidden_dim):
    ks = jax.random.split(key, 8)
    wfc = xavier_uniform(ks[0], state_dim, hidden_dim)
    bfc = linear_bias(ks[1], state_dim, hidden_dim)
    wmu = xavier_uniform(ks[2], hidden_dim, continuous_action_dim)
    bmu = linear_bias(ks[3], hidden_dim, continuous_action_dim)
    wls = xavier_uniform(ks[4], hidden_dim, continuous_action_dim)
    bls = linear_bias(ks[5], hidden_dim, continuous_action_dim)
    wlg = xavier_uniform(ks[6], hidden_dim, discrete_action_dim)
    blg = linear_bias(ks[7], hidden_dim, discrete_action_dim)
    return (wfc, bfc, wmu, bmu, wls, bls, wlg, blg)


def reference_forward(state, params):
    (wfc, bfc, wmu, bmu, wls, bls, wlg, blg) = params
    h = jnp.maximum(state @ wfc + bfc, 0.0)
    mu = h @ wmu + bmu
    std = jnp.exp(h @ wls + bls)
    logits = h @ wlg + blg
    return mu, std, logits


if __name__ == "__main__":
    # small, forward-consistent shapes
    batch = 2
    state_dim = 16
    continuous_action_dim = 4
    discrete_action_dim = 6
    hidden_dim = 32

    key = jax.random.PRNGKey(0)
    k_params, k_state = jax.random.split(key)

    params = init_params(k_params, state_dim, continuous_action_dim,
                         discrete_action_dim, hidden_dim)
    state = jax.random.normal(k_state, (batch, state_dim), jnp.float32)

    mu, std, logits = jax.block_until_ready(actor_forward(state, params))

    # sanity check against pure-JAX reference
    mu_r, std_r, logits_r = reference_forward(state, params)
    assert mu.shape == (batch, continuous_action_dim)
    assert std.shape == (batch, continuous_action_dim)
    assert logits.shape == (batch, discrete_action_dim)
    assert jnp.allclose(mu, mu_r, atol=1e-5)
    assert jnp.allclose(std, std_r, atol=1e-5)
    assert jnp.allclose(logits, logits_r, atol=1e-5)

    print("KERNEL_OK")
</pallas_src>

<mosaic_0001>
module attributes {stable_mosaic.version = 11 : i64} {
  func.func @_actor_kernel(%arg0: i32, %arg1: memref<8x16xf32, #tpu.memory_space<vmem>>, %arg2: memref<16x32xf32, #tpu.memory_space<vmem>>, %arg3: memref<1x32xf32, #tpu.memory_space<vmem>>, %arg4: memref<32x128xf32, #tpu.memory_space<vmem>>, %arg5: memref<1x128xf32, #tpu.memory_space<vmem>>, %arg6: memref<8x128xf32, #tpu.memory_space<vmem>>) attributes {dimension_semantics = [#tpu.dimension_semantics<parallel>], iteration_bounds = array<i64: 1>, scalar_prefetch = 0 : i64, scratch_operands = 0 : i64, tpu.core_type = #tpu.core_type<tc>, window_params = [{transform_indices = @transform_0, window_bounds = array<i64: 8, 16>}, {pipeline_mode = #tpu.pipeline_mode<synchronous>, transform_indices = @transform_1, window_bounds = array<i64: 16, 32>}, {pipeline_mode = #tpu.pipeline_mode<synchronous>, transform_indices = @transform_2, window_bounds = array<i64: 1, 32>}, {pipeline_mode = #tpu.pipeline_mode<synchronous>, transform_indices = @transform_3, window_bounds = array<i64: 32, 128>}, {pipeline_mode = #tpu.pipeline_mode<synchronous>, transform_indices = @transform_4, window_bounds = array<i64: 1, 128>}, {transform_indices = @transform_5, window_bounds = array<i64: 8, 128>}]} {
    %c0 = arith.constant 0 : index
    %c0_0 = arith.constant 0 : index
    %0 = vector.load %arg1[%c0, %c0_0] : memref<8x16xf32, #tpu.memory_space<vmem>>, vector<8x16xf32>
    %c0_1 = arith.constant 0 : index
    %c0_2 = arith.constant 0 : index
    %1 = vector.load %arg2[%c0_1, %c0_2] : memref<16x32xf32, #tpu.memory_space<vmem>>, vector<16x32xf32>
    %cst = arith.constant dense<0.000000e+00> : vector<8x32xf32>
    %2 = tpu.matmul %0, %1, %cst {dimension_numbers = #tpu.dot_dimension_numbers<[1], [0], [0], [1], [0, 0, 1, 1], [], []>} : vector<8x16xf32>, vector<16x32xf32>, vector<8x32xf32> -> vector<8x32xf32>
    %c0_3 = arith.constant 0 : index
    %c0_4 = arith.constant 0 : index
    %3 = vector.load %arg3[%c0_3, %c0_4] : memref<1x32xf32, #tpu.memory_space<vmem>>, vector<1x32xf32>
    %4 = vector.broadcast %3 : vector<1x32xf32> to vector<8x32xf32>
    %5 = arith.addf %2, %4 : vector<8x32xf32>
    %cst_5 = arith.constant 0.000000e+00 : f32
    %6 = vector.broadcast %cst_5 : f32 to vector<8x32xf32>
    %7 = arith.maximumf %5, %6 : vector<8x32xf32>
    %c0_6 = arith.constant 0 : index
    %c0_7 = arith.constant 0 : index
    %8 = vector.load %arg4[%c0_6, %c0_7] : memref<32x128xf32, #tpu.memory_space<vmem>>, vector<32x128xf32>
    %cst_8 = arith.constant dense<0.000000e+00> : vector<8x128xf32>
    %9 = tpu.matmul %7, %8, %cst_8 {dimension_numbers = #tpu.dot_dimension_numbers<[1], [0], [0], [1], [0, 0, 1, 1], [], []>} : vector<8x32xf32>, vector<32x128xf32>, vector<8x128xf32> -> vector<8x128xf32>
    %c0_9 = arith.constant 0 : index
    %c0_10 = arith.constant 0 : index
    %10 = vector.load %arg5[%c0_9, %c0_10] : memref<1x128xf32, #tpu.memory_space<vmem>>, vector<1x128xf32>
    %11 = vector.broadcast %10 : vector<1x128xf32> to vector<8x128xf32>
    %12 = arith.addf %9, %11 : vector<8x128xf32>
    %13 = tpu.iota {dimensions = array<i32: 1>} : vector<1x128xi32>
    %c4_i32 = arith.constant 4 : i32
    %14 = vector.broadcast %c4_i32 : i32 to vector<1x128xi32>
    %15 = arith.cmpi sge, %13, %14 : vector<1x128xi32>
    %c8_i32 = arith.constant 8 : i32
    %16 = vector.broadcast %c8_i32 : i32 to vector<1x128xi32>
    %17 = arith.cmpi slt, %13, %16 : vector<1x128xi32>
    %18 = arith.andi %15, %17 : vector<1x128xi1>
    %19 = math.exp %12 : vector<8x128xf32>
    %20 = vector.shape_cast %18 : vector<1x128xi1> to vector<1x128xi1>
    %21 = vector.broadcast %20 : vector<1x128xi1> to vector<8x128xi1>
    %22 = arith.select %21, %19, %12 : vector<8x128xi1>, vector<8x128xf32>
    %c0_11 = arith.constant 0 : index
    %c0_12 = arith.constant 0 : index
    %23 = vector.load %arg6[%c0_11, %c0_12] : memref<8x128xf32, #tpu.memory_space<vmem>>, vector<8x128xf32>
    tpu.vector_store %arg6[%c0_11, %c0_12], %22 {strides = array<i32>} : memref<8x128xf32, #tpu.memory_space<vmem>>, vector<8x128xf32>,
    return
  }
  func.func @transform_0(%arg0: i32) -> (i32, i32) {
    %c0_i32 = arith.constant 0 : i32
    %c0_i32_0 = arith.constant 0 : i32
    return %arg0, %c0_i32 : i32, i32
  }
  func.func @transform_1(%arg0: i32) -> (i32, i32) {
    %c0_i32 = arith.constant 0 : i32
    %c0_i32_0 = arith.constant 0 : i32
    %c0_i32_1 = arith.constant 0 : i32
    return %c0_i32, %c0_i32_0 : i32, i32
  }
  func.func @transform_2(%arg0: i32) -> (i32, i32) {
    %c0_i32 = arith.constant 0 : i32
    %c0_i32_0 = arith.constant 0 : i32
    %c0_i32_1 = arith.constant 0 : i32
    return %c0_i32, %c0_i32_0 : i32, i32
  }
  func.func @transform_3(%arg0: i32) -> (i32, i32) {
    %c0_i32 = arith.constant 0 : i32
    %c0_i32_0 = arith.constant 0 : i32
    %c0_i32_1 = arith.constant 0 : i32
    return %c0_i32, %c0_i32_0 : i32, i32
  }
  func.func @transform_4(%arg0: i32) -> (i32, i32) {
    %c0_i32 = arith.constant 0 : i32
    %c0_i32_0 = arith.constant 0 : i32
    %c0_i32_1 = arith.constant 0 : i32
    return %c0_i32, %c0_i32_0 : i32, i32
  }
  func.func @transform_5(%arg0: i32) -> (i32, i32) {
    %c0_i32 = arith.constant 0 : i32
    %c0_i32_0 = arith.constant 0 : i32
    return %arg0, %c0_i32 : i32, i32
  }
}

</mosaic_0001>

<llo_original>
// kernel: tpu_custom_call.1
$region0: #{tpu_custom_call.1}
  #allocation0 [shape = 'u32[]', space=smem, size = 0x4, offset = 0x4, fixed_abs, tag = 'smem constant byte address 0x4 - core index']
  #allocation1 [shape = 'u32[144,128]{1,0:T(1,128)}', space=vmem, size = 0x12000, scoped, tag = 'internal scratch']
  %s0 = inlined_call_operand.hbm [shape: f32[8,16], index: 0, kind: input, shape index: {}]
  %s1 = inlined_call_operand.hbm [shape: f32[16,32], index: 1, kind: input, shape index: {}]
  %s2 = inlined_call_operand.vmem [shape: f32[1,32], index: 2, kind: input, shape index: {}]
  %s3 = inlined_call_operand.hbm [shape: f32[32,128], index: 3, kind: input, shape index: {}]
  %s4 = inlined_call_operand.vmem [shape: f32[1,128], index: 4, kind: input, shape index: {}]
  %s5 = inlined_call_operand.hbm [shape: f32[8,128], index: 5, kind: output, shape index: {}]
  %s6 = sld [smem:[#allocation0]]
  $region42: #{tpu_custom_call.1} parent=0
    _
  %s8 = ssub.s32 1, %s6
  %s9 = scalar_select 0, %s8, %s6
  $region1: #{tpu_custom_call.1} parent=0
    #allocation2 [shape = 'u8[4096]{0}', space=vmem, size = 0x1000, scoped, tag = 'input window, operand 0, single buffered']
    #allocation3 [shape = 's32[1]{0}', space=sflag, size = 0x4, scoped, tag = 'scoped memory for tpu_custom_call.1']
    #allocation4 [shape = 's32[1]{0}', space=sflag, size = 0x4, scoped, tag = 'scoped memory for tpu_custom_call.1']
    #allocation5 [shape = 'u8[8192]{0}', space=vmem, size = 0x2000, scoped, tag = 'input window, operand 1, single buffered']
    #allocation6 [shape = 's32[1]{0}', space=sflag, size = 0x4, scoped, tag = 'scoped memory for tpu_custom_call.1']
    #allocation7 [shape = 'u8[16384]{0}', space=vmem, size = 0x4000, scoped, tag = 'input window, operand 3, single buffered']
    #allocation8 [shape = 'u8[4096]{0}', space=vmem, size = 0x1000, scoped, tag = 'output window, operand 0, single buffered']
    %10 = vsyncpa [#allocation3], 0
    %11 = vsyncpa [#allocation6], 0
    %12 = vsyncpa [#allocation4], 0
    // Predicated region
    $region2: #{tpu_custom_call.1} parent=1 // pred_check
      _
    $region3: #{tpu_custom_call.1} parent=1 // pred_check_branch
      %14 = sbr.rel (0) target = $region5
    $region4: #{tpu_custom_call.1} parent=1 // pred_region
      %s16 = ssub.s32 128, 128
      %17 = vsyncadd [#allocation3], %s16
      %s19 = sshll.u32 [#allocation2], 4
      %s20 = int_to_ptr.vmem [resolvable:$true] %s19
      %22 = dma.hbm_to_vmem [thread:$0]  %s0, 128, %s20, [#allocation3]
    $region5: #{tpu_custom_call.1} parent=1 // pred_fallthru
      _
    // Predicated region
    $region6: #{tpu_custom_call.1} parent=1 // pred_check
      _
    $region7: #{tpu_custom_call.1} parent=1 // pred_check_branch
      %24 = sbr.rel (0) target = $region9
    $region8: #{tpu_custom_call.1} parent=1 // pred_region
      %s26 = ssub.s32 256, 256
      %27 = vsyncadd [#allocation6], %s26
      %s28 = sshll.u32 [#allocation5], 4
      %s29 = int_to_ptr.vmem [resolvable:$true] %s28
      %34 = dma.hbm_to_vmem [thread:$0]  %s1, 256, %s29, [#allocation6], 128, 128, 8
    $region9: #{tpu_custom_call.1} parent=1 // pred_fallthru
      _
    // Predicated region
    $region10: #{tpu_custom_call.1} parent=1 // pred_check
      _
    $region11: #{tpu_custom_call.1} parent=1 // pred_check_branch
      %36 = sbr.rel (0) target = $region13
    $region12: #{tpu_custom_call.1} parent=1 // pred_region
      _
    $region13: #{tpu_custom_call.1} parent=1 // pred_fallthru
      _
    // Predicated region
    $region14: #{tpu_custom_call.1} parent=1 // pred_check
      _
    $region15: #{tpu_custom_call.1} parent=1 // pred_check_branch
      %38 = sbr.rel (0) target = $region17
    $region16: #{tpu_custom_call.1} parent=1 // pred_region
      %s40 = ssub.s32 512, 512
      %41 = vsyncadd [#allocation6], %s40
      %s42 = sshll.u32 [#allocation7], 4
      %s43 = int_to_ptr.vmem [resolvable:$true] %s42
      %48 = dma.hbm_to_vmem [thread:$0]  %s3, 512, %s43, [#allocation6], 128, 128, 8
    $region17: #{tpu_custom_call.1} parent=1 // pred_fallthru
      _
    // Predicated region
    $region18: #{tpu_custom_call.1} parent=1 // pred_check
      _
    $region19: #{tpu_custom_call.1} parent=1 // pred_check_branch
      %50 = sbr.rel (0) target = $region21
    $region20: #{tpu_custom_call.1} parent=1 // pred_region
      _
    $region21: #{tpu_custom_call.1} parent=1 // pred_fallthru
      _
    // Predicated region
    $region22: #{tpu_custom_call.1} parent=1 // pred_check
      _
    $region23: #{tpu_custom_call.1} parent=1 // pred_check_branch
      %52 = sbr.rel (0) target = $region25
    $region24: #{tpu_custom_call.1} parent=1 // pred_region
      %53 = dma.done [#allocation3], 128
    $region25: #{tpu_custom_call.1} parent=1 // pred_fallthru
      _
    // Predicated region
    $region26: #{tpu_custom_call.1} parent=1 // pred_check
      _
    $region27: #{tpu_custom_call.1} parent=1 // pred_check_branch
      %55 = sbr.rel (0) target = $region29
    $region28: #{tpu_custom_call.1} parent=1 // pred_region
      %56 = dma.done [#allocation6], 256
    $region29: #{tpu_custom_call.1} parent=1 // pred_fallthru
      _
    // Predicated region
    $region30: #{tpu_custom_call.1} parent=1 // pred_check
      _
    $region31: #{tpu_custom_call.1} parent=1 // pred_check_branch
      %58 = sbr.rel (0) target = $region33
    $region32: #{tpu_custom_call.1} parent=1 // pred_region
      %59 = dma.done [#allocation6], 512
    $region33: #{tpu_custom_call.1} parent=1 // pred_fallthru
      _
    %v60 = vld [vmem:[#allocation2] sm:$0xff]
    %v61 = vld [vmem:[#allocation5] sm:$0xff]
    %v62 = vld [vmem:[#allocation5 + $0x8] sm:$0xff]
    %v63 = vld [vmem:[%s2] sm:$0x1]
    %v65 = vlaneseq
    %v66 = vshrl.u32 %v65, 7
    %v67 = vsub.s32 0, %v66
    %v68 = vrot.slane %v63, %v67
    %vm70 = vcmask 130048
    %v72 = vsel %vm70, %v60, 0
    %74 = vmatprep.subr.mxu0 0.0
    %75 = vmatpush1.msra.mxu0 %v61
    %76 = vmatprep.subr.mxu0 0.0
    %77 = vmatpush1.msra.mxu0 %v62
    %78 = vmatprep.subr.mxu0 0.0
    %79 = vmatpush1.msra.mxu0 0.0
    %80 = vmatprep.subr.mxu0 0.0
    %81 = vmatpush1.msra.mxu0 0.0
    %82 = vmatprep.subr.mxu0 0.0
    %83 = vmatpush1.msra.mxu0 0.0
    %84 = vmatprep.subr.mxu0 0.0
    %85 = vmatpush1.msra.mxu0 0.0
    %86 = vmatprep.subr.mxu0 0.0
    %87 = vmatpush1.msra.mxu0 0.0
    %88 = vmatprep.subr.mxu0 0.0
    %89 = vmatpush1.msra.mxu0 0.0
    %90 = vmatprep.subr.mxu0 0.0
    %91 = vmatpush1.msra.mxu0 0.0
    %92 = vmatprep.subr.mxu0 0.0
    %93 = vmatpush1.msra.mxu0 0.0
    %94 = vmatprep.subr.mxu0 0.0
    %95 = vmatpush1.msra.mxu0 0.0
    %96 = vmatprep.subr.mxu0 0.0
    %97 = vmatpush1.msra.mxu0 0.0
    %98 = vmatprep.subr.mxu0 0.0
    %99 = vmatpush1.msra.mxu0 0.0
    %100 = vmatprep.subr.mxu0 0.0
    %101 = vmatpush1.msra.mxu0 0.0
    %102 = vmatprep.subr.mxu0 0.0
    %103 = vmatpush1.msra.mxu0 0.0
    %104 = vmatprep.subr.mxu0 0.0
    %105 = vmatpush1.msra.mxu0 0.0
    %106 = vmatprep.subr.mxu0 0.0
    %107 = vmatpush1.msra.mxu0 0.0
    %108 = vmatprep.subr.mxu0 0.0
    %109 = vmatpush1.msra.mxu0 0.0
    %110 = vmatprep.subr.mxu0 0.0
    %111 = vmatpush1.msra.mxu0 0.0
    %112 = vmatprep.subr.mxu0 0.0
    %113 = vmatpush1.msra.mxu0 0.0
    %114 = vmatprep.subr.mxu0 0.0
    %115 = vmatpush1.msra.mxu0 0.0
    %116 = vmatprep.subr.mxu0 0.0
    %117 = vmatpush1.msra.mxu0 0.0
    %118 = vmatprep.subr.mxu0 0.0
    %119 = vmatpush1.msra.mxu0 0.0
    %120 = vmatprep.subr.mxu0 0.0
    %121 = vmatpush1.msra.mxu0 0.0
    %122 = vmatprep.subr.mxu0 0.0
    %123 = vmatpush1.msra.mxu0 0.0
    %124 = vmatprep.subr.mxu0 0.0
    %125 = vmatpush1.msra.mxu0 0.0
    %126 = vmatprep.subr.mxu0 0.0
    %127 = vmatpush1.msra.mxu0 0.0
    %128 = vmatprep.subr.mxu0 0.0
    %129 = vmatpush1.msra.mxu0 0.0
    %130 = vmatprep.subr.mxu0 0.0
    %131 = vmatpush1.msra.mxu0 0.0
    %132 = vmatprep.subr.mxu0 0.0
    %133 = vmatpush1.msra.mxu0 0.0
    %134 = vmatprep.subr.mxu0 0.0
    %135 = vmatpush1.msra.mxu0 0.0
    %136 = vmatprep.subr.mxu0 0.0
    %137 = vmatpush1.msra.mxu0 0.0
    %138 = vmatprep.mubr.f32.mxu0 0.0
    %139 = vmatmul.mubr.f32.gmra.mrb[0].mxu0 %v72
    %v140 = vpop.f32.mrb[0].mxu0
    %v141 = vadd.f32 %v68, %v140
    %v142 = vpop.f32.mrb[0].mxu0
    %143 = vdwg.mxu0
    %v144 = vmax.f32 %v141, 0.0
    %v145 = vld [vmem:[#allocation7] sm:$0xff]
    %v146 = vld [vmem:[#allocation7 + $0x8] sm:$0xff]
    %v147 = vld [vmem:[#allocation7 + $0x10] sm:$0xff]
    %v148 = vld [vmem:[#allocation7 + $0x18] sm:$0xff]
    %v149 = vld [vmem:[%s4] sm:$0x1]
    %v151 = vlaneseq
    %v152 = vshrl.u32 %v151, 7
    %v153 = vsub.s32 0, %v152
    %v154 = vrot.slane %v149, %v153
    %vm156 = vcmask 261120
    %v158 = vsel %vm156, %v144, 0
    %160 = vmatprep.subr.mxu0 0.0
    %161 = vmatpush1.msra.mxu0 %v145
    %162 = vmatprep.subr.mxu0 0.0
    %163 = vmatpush1.msra.mxu0 %v146
    %164 = vmatprep.subr.mxu0 0.0
    %165 = vmatpush1.msra.mxu0 %v147
    %166 = vmatprep.subr.mxu0 0.0
    %167 = vmatpush1.msra.mxu0 %v148
    %168 = vmatprep.subr.mxu0 0.0
    %169 = vmatpush1.msra.mxu0 0.0
    %170 = vmatprep.subr.mxu0 0.0
    %171 = vmatpush1.msra.mxu0 0.0
    %172 = vmatprep.subr.mxu0 0.0
    %173 = vmatpush1.msra.mxu0 0.0
    %174 = vmatprep.subr.mxu0 0.0
    %175 = vmatpush1.msra.mxu0 0.0
    %176 = vmatprep.subr.mxu0 0.0
    %177 = vmatpush1.msra.mxu0 0.0
    %178 = vmatprep.subr.mxu0 0.0
    %179 = vmatpush1.msra.mxu0 0.0
    %180 = vmatprep.subr.mxu0 0.0
    %181 = vmatpush1.msra.mxu0 0.0
    %182 = vmatprep.subr.mxu0 0.0
    %183 = vmatpush1.msra.mxu0 0.0
    %184 = vmatprep.subr.mxu0 0.0
    %185 = vmatpush1.msra.mxu0 0.0
    %186 = vmatprep.subr.mxu0 0.0
    %187 = vmatpush1.msra.mxu0 0.0
    %188 = vmatprep.subr.mxu0 0.0
    %189 = vmatpush1.msra.mxu0 0.0
    %190 = vmatprep.subr.mxu0 0.0
    %191 = vmatpush1.msra.mxu0 0.0
    %192 = vmatprep.subr.mxu0 0.0
    %193 = vmatpush1.msra.mxu0 0.0
    %194 = vmatprep.subr.mxu0 0.0
    %195 = vmatpush1.msra.mxu0 0.0
    %196 = vmatprep.subr.mxu0 0.0
    %197 = vmatpush1.msra.mxu0 0.0
    %198 = vmatprep.subr.mxu0 0.0
    %199 = vmatpush1.msra.mxu0 0.0
    %200 = vmatprep.subr.mxu0 0.0
    %201 = vmatpush1.msra.mxu0 0.0
    %202 = vmatprep.subr.mxu0 0.0
    %203 = vmatpush1.msra.mxu0 0.0
    %204 = vmatprep.subr.mxu0 0.0
    %205 = vmatpush1.msra.mxu0 0.0
    %206 = vmatprep.subr.mxu0 0.0
    %207 = vmatpush1.msra.mxu0 0.0
    %208 = vmatprep.subr.mxu0 0.0
    %209 = vmatpush1.msra.mxu0 0.0
    %210 = vmatprep.subr.mxu0 0.0
    %211 = vmatpush1.msra.mxu0 0.0
    %212 = vmatprep.subr.mxu0 0.0
    %213 = vmatpush1.msra.mxu0 0.0
    %214 = vmatprep.subr.mxu0 0.0
    %215 = vmatpush1.msra.mxu0 0.0
    %216 = vmatprep.subr.mxu0 0.0
    %217 = vmatpush1.msra.mxu0 0.0
    %218 = vmatprep.subr.mxu0 0.0
    %219 = vmatpush1.msra.mxu0 0.0
    %220 = vmatprep.subr.mxu0 0.0
    %221 = vmatpush1.msra.mxu0 0.0
    %222 = vmatprep.subr.mxu0 0.0
    %223 = vmatpush1.msra.mxu0 0.0
    %224 = vmatprep.mubr.f32.mxu0 0.0
    %225 = vmatmul.mubr.f32.gmra.mrb[0].mxu0 %v158
    %v226 = vpop.f32.mrb[0].mxu0
    %v227 = vadd.f32 %v154, %v226
    %v228 = vpop.f32.mrb[0].mxu0
    %229 = vdwg.mxu0
    %v230 = vlaneseq
    %v231 = vand.u32 %v230, 127
    %vm232 = vcmp.ge.s32.totalorder %v231, 4
    %vm233 = vcmp.lt.s32.totalorder %v231, 8
    %vm234 = vmand %vm232, %vm233
    %v235 = vmul.f32 %v227, 1.442695
    %v236 = vpow.pop %v235
    %v237 = vsel %vm234, 1, 0
    %vm238 = vcmp.eq.s32.totalorder %v237, 1
    %v239 = vsel %vm238, %v236, %v227
    %240 = vst [vmem:[#allocation8] sm:$0xff] %v239
    // Predicated region
    $region34: #{tpu_custom_call.1} parent=1 // pred_check
      _
    $region35: #{tpu_custom_call.1} parent=1 // pred_check_branch
      %242 = sbr.rel (0) target = $region37
    $region36: #{tpu_custom_call.1} parent=1 // pred_region
      %s244 = ssub.s32 128, 128
      %245 = vsyncadd [#allocation4], %s244
      %s247 = sshll.u32 [#allocation8], 4
      %s248 = int_to_ptr.vmem [resolvable:$true] %s247
      %250 = dma.vmem_to_hbm [thread:$0]  %s248, 128, %s5, [#allocation4]
    $region37: #{tpu_custom_call.1} parent=1 // pred_fallthru
      _
    // Predicated region
    $region38: #{tpu_custom_call.1} parent=1 // pred_check
      _
    $region39: #{tpu_custom_call.1} parent=1 // pred_check_branch
      %252 = sbr.rel (0) target = $region41
    $region40: #{tpu_custom_call.1} parent=1 // pred_region
      %253 = dma.done [#allocation4], 128
    $region41: #{tpu_custom_call.1} parent=1 // pred_fallthru
      _
    %254 = vsyncpa [#allocation3], 1
    %255 = vsyncpa [#allocation6], 1
    %256 = vsyncpa [#allocation4], 1

</llo_original>
